<compile_context>
chip_gen: v5e
topology: v5e:2x2
jax: 0.10.0
libtpu: 0.0.40
codegen_flags: <defaults>
</compile_context>

<pallas_src>
import functools

import numpy as np
import jax
import jax.numpy as jnp
from jax.experimental import pallas as pl
from jax.experimental.pallas import tpu as pltpu


# ----------------------------- Pallas kernel --------------------------------
def _cross_conv_block_kernel(xcat_ref, fccat_ref, wcat_ref, brc_ref,
                             w1t_ref, w2t_ref, ebc_ref, out_ref):
    # xcat_ref : (BT, N, 2*C_in*N)   packed [row-view | col-view] of x (lane-dense)
    # fccat_ref: (BT, 2*N*N)         packed [fc | fc^T]                (lane-dense)
    # wcat_ref : (2*C_in*N, 2*C_out) block-diag [[Wr, 0], [0, Wc]]     (f32)
    # brc_ref  : (1, C_out)          br + bc
    # w1t_ref  : (C_se, H)           SE fc1 weight, transposed
    # w2t_ref  : (H, C_se)           SE fc2 weight, transposed
    # ebc_ref  : (2*N, 2*N*N)        constant 0/1 broadcast matrix [[Er,Ec],[Ec,Er]]
    # out_ref  : (BT, N*N)           flattened symmetric output adjacency (f32)
    bt, n, kdim = xcat_ref.shape
    c_out = brc_ref.shape[1]
    nn = n * n
    inv_n = 1.0 / n
    inv_nn = 1.0 / nn

    x = xcat_ref[...].astype(jnp.float32).reshape(bt * n, kdim)
    fc_cat = fccat_ref[...].astype(jnp.float32)                    # (bt, 2*nn)

    # --- cross ("edge-to-edge") conv: one MXU matmul, C_in folded into K.
    #     Block-diagonal weights emit [row_i | col_j] features per node.
    rc = jnp.dot(x, wcat_ref[...], preferred_element_type=jnp.float32)
    rc3 = rc.reshape(bt, n, 2 * c_out)      # [..., :c_out]=row, [..., c_out:]=col

    brc = brc_ref[...]                                              # (1, c_out)

    # --- SE squeeze: channel means from row/col sums (no (C,N,N) tensor) -----
    rc_sum = jnp.sum(rc3, axis=1)                                   # (bt, 2*c_out)
    pooled_conv = (rc_sum[:, :c_out] + rc_sum[:, c_out:]) * inv_n + brc
    pooled_fc = jnp.sum(fc_cat[:, :nn], axis=1, keepdims=True) * inv_nn
    pooled = jnp.concatenate([pooled_conv, pooled_fc], axis=1)      # (bt, c_se)

    # --- SE excitation, batched over the whole tile, f32 ----------------------
    s1 = jax.nn.relu(jnp.dot(pooled, w1t_ref[...],
                             preferred_element_type=jnp.float32))   # (bt, H)
    s2 = jax.nn.sigmoid(jnp.dot(s1, w2t_ref[...],
                                preferred_element_type=jnp.float32))  # (bt, c_se)
    s2_conv = s2[:, :c_out]                                         # (bt, c_out)
    s2_fc = s2[:, c_out:c_out + 1]                                  # (bt, 1)

    # --- channel-weighted collapse: out[b,i,j] = a[b,i]+d[b,j]+const[b]+s_fc*fc
    a = jnp.sum(rc3[:, :, :c_out] * s2_conv[:, None, :], axis=2)    # (bt, n)
    d = jnp.sum(rc3[:, :, c_out:] * s2_conv[:, None, :], axis=2)    # (bt, n)
    const = jnp.sum(s2_conv * brc, axis=1, keepdims=True)           # (bt, 1)

    # Lane-dense broadcast of a/d over the flattened (i,j) grid via the MXU:
    # first nn lanes -> pre[b, i*n+j], last nn lanes -> pre^T[b, i*n+j].
    ad = jnp.concatenate([a, d], axis=1)                            # (bt, 2n)
    bcast = jnp.dot(ad, ebc_ref[...], preferred_element_type=jnp.float32)

    pre = bcast + const + s2_fc * fc_cat                            # (bt, 2*nn)

    # --- tanh -> threshold -> symmetrize (same order as the PyTorch module) ---
    outv = jnp.tanh(pre)
    outv = jnp.where(jnp.abs(outv) < 0.3, 0.0, outv)
    out_ref[...] = (0.5 * (outv[:, :nn] + outv[:, nn:])).astype(out_ref.dtype)


# ------------------------------ wrapper --------------------------------------
@functools.partial(jax.jit,
                   static_argnames=("nrois", "in_channels", "block_batch",
                                    "compute_dtype"))
def cross_conv_block_pallas(windows, origin_fc, params, *, nrois, in_channels,
                            block_batch=512, compute_dtype=jnp.bfloat16):
    """Fused CrossConvBlock forward; returns out_adj of shape (B, nrois, nrois)."""
    n = nrois
    c_in = in_channels
    nn = n * n
    kdim = 2 * c_in * n

    x = windows.reshape(-1, c_in, n, n)
    fc = origin_fc
    b = x.shape[0]

    wr, wc, br, bc, w1, w2 = (params["wr"], params["wc"], params["br"],
                              params["bc"], params["w1"], params["w2"])
    c_out = wr.shape[1]
    hid, c_se = w1.shape

    # ---- host-side layout prep (fused into one relayout pass under jit) -----
    # packed x: [b, i, c*N+k] = x[b,c,i,k] ; [b, j, C_in*N + c*N+k] = x[b,c,k,j]
    x_row = jnp.transpose(x, (0, 2, 1, 3)).reshape(b, n, c_in * n)
    x_col = jnp.transpose(x, (0, 3, 1, 2)).reshape(b, n, c_in * n)
    x_cat = jnp.concatenate([x_row, x_col], axis=-1).astype(compute_dtype)
    # packed fc: [fc | fc^T], flattened row-major
    fc_cat = jnp.concatenate([fc.reshape(b, nn),
                              jnp.swapaxes(fc, 1, 2).reshape(b, nn)],
                             axis=-1).astype(compute_dtype)

    # block-diagonal conv weights (f32): rows (c*N+k), cols [row-out | col-out]
    wr_mat = jnp.transpose(wr, (0, 2, 1)).reshape(c_in * n, c_out).astype(jnp.float32)
    wc_mat = jnp.transpose(wc, (0, 2, 1)).reshape(c_in * n, c_out).astype(jnp.float32)
    zero = jnp.zeros((c_in * n, c_out), jnp.float32)
    w_cat = jnp.concatenate([jnp.concatenate([wr_mat, zero], axis=1),
                             jnp.concatenate([zero, wc_mat], axis=1)], axis=0)
    brc = (br + bc).reshape(1, c_out).astype(jnp.float32)
    w1t = jnp.transpose(w1).astype(jnp.float32)           # (c_se, hid)
    w2t = jnp.transpose(w2).astype(jnp.float32)           # (hid, c_se)

    # constant 0/1 broadcast matrix: [a|d] @ e_both -> [pre | pre^T] lane-dense
    e_row = np.kron(np.eye(n, dtype=np.float32), np.ones((1, n), np.float32))
    e_col = np.kron(np.ones((1, n), np.float32), np.eye(n, dtype=np.float32))
    e_both = jnp.asarray(np.block([[e_row, e_col], [e_col, e_row]]))  # (2n, 2nn)

    # ---- batch-tile sizing with a padding-aware VMEM estimate ----------------
    eb = np.dtype(compute_dtype).itemsize
    per_sample = (2 * (n * kdim + 2 * nn) * eb      # double-buffered input blocks
                  + 2 * nn * 4                      # double-buffered output block
                  + 2 * n * kdim * 4                # x upcast + rc (lane-padded)
                  + n * 128 * 4                     # a/d weighted intermediates
                  + 3 * 2 * nn * 4)                 # pre / tanh / halves (f32)
    vmem_budget = 36 * 1024 * 1024                  # conservative for v7x (64 MiB/TC)
    bt_cap = max(32, (vmem_budget // per_sample) // 32 * 32)
    bt_pref = max(32, (min(block_batch, bt_cap) // 32) * 32)

    if b < 16:
        bt, n_tiles = b, 1                          # single full-extent tile
    else:
        n_tiles = max(2, pl.cdiv(b, bt_pref))       # >= 2 grid steps (v7x dual TC)
        if n_tiles % 2:
            n_tiles += 1                            # even step count for 2 TCs
        bt = ((pl.cdiv(b, n_tiles) + 31) // 32) * 32
        n_tiles = pl.cdiv(b, bt)
        if n_tiles == 1:
            bt = b
    b_pad = n_tiles * bt
    if b_pad != b:                                  # fused with the relayout pass
        x_cat = jnp.pad(x_cat, ((0, b_pad - b), (0, 0), (0, 0)))
        fc_cat = jnp.pad(fc_cat, ((0, b_pad - b), (0, 0)))

    grid_spec = pltpu.PrefetchScalarGridSpec(
        num_scalar_prefetch=0,
        grid=(n_tiles,),
        in_specs=[
            pl.BlockSpec((bt, n, kdim),     lambda i: (i, 0, 0)),   # packed x
            pl.BlockSpec((bt, 2 * nn),      lambda i: (i, 0)),      # [fc | fc^T]
            pl.BlockSpec((kdim, 2 * c_out), lambda i: (0, 0)),      # conv weights
            pl.BlockSpec((1, c_out),        lambda i: (0, 0)),      # br + bc
            pl.BlockSpec((c_se, hid),       lambda i: (0, 0)),      # SE fc1^T
            pl.BlockSpec((hid, c_se),       lambda i: (0, 0)),      # SE fc2^T
            pl.BlockSpec((2 * n, 2 * nn),   lambda i: (0, 0)),      # broadcast mat
        ],
        out_specs=pl.BlockSpec((bt, nn), lambda i: (i, 0)),
    )

    out_flat = pl.pallas_call(
        _cross_conv_block_kernel,
        out_shape=jax.ShapeDtypeStruct((b_pad, nn), jnp.float32),
        grid_spec=grid_spec,
        compiler_params=pltpu.CompilerParams(
            dimension_semantics=("parallel",),
            vmem_limit_bytes=48 * 1024 * 1024),
    )(x_cat, fc_cat, w_cat, brc, w1t, w2t, e_both)

    return out_flat[:b].reshape(b, n, n)


# ------------------- host-side glue (dynamic-shape part) --------------------
def dense_to_sparse(adj):
    """torch_geometric.utils.dense_to_sparse for a batched (B, N, N) adjacency."""
    a = np.asarray(adj)
    b_idx, r_idx, c_idx = np.nonzero(a)
    n = a.shape[-1]
    edge_index = np.stack([r_idx + b_idx * n, c_idx + b_idx * n], axis=0)
    edge_attr = a[b_idx, r_idx, c_idx]
    return jnp.asarray(edge_index), jnp.asarray(edge_attr)


def cross_conv_block_forward(windows, batch, batchsize, origin_fc, params, *,
                             nrois, in_channels, compute_dtype=jnp.bfloat16):
    out_adj = cross_conv_block_pallas(windows, origin_fc, params, nrois=nrois,
                                      in_channels=in_channels,
                                      compute_dtype=compute_dtype)
    masked = jnp.where(out_adj >= 0.3, out_adj, jnp.zeros_like(out_adj))
    # TODO(synk): dense_to_sparse yields a data-dependent number of edges; no
    # fixed-shape Pallas equivalent, so the edge-list extraction stays on host.
    new_edge_index, new_edge_attr = dense_to_sparse(masked)
    return new_edge_index, new_edge_attr, out_adj


# ------------------------- deterministic parameters --------------------------
def init_params(key, in_channels, nrois):
    c_out = 16                 # out_channels_list[0]
    c_se = c_out + 1           # SE channels (conv out + original FC)
    hid = c_se // 2            # reduction = 2
    ks = jax.random.split(key, 6)
    scale_r = 1.0 / np.sqrt(in_channels * nrois)
    return {
        "wr": (jax.random.normal(ks[0], (in_channels, c_out, nrois), jnp.float32) * scale_r),
        "wc": (jax.random.normal(ks[1], (in_channels, c_out, nrois), jnp.float32) * scale_r),
        "br": (jax.random.normal(ks[2], (c_out, 1), jnp.float32) * 0.01),
        "bc": (jax.random.normal(ks[3], (c_out, 1), jnp.float32) * 0.01),
        "w1": (jax.random.normal(ks[4], (hid, c_se), jnp.float32) / np.sqrt(c_se)),
        "w2": (jax.random.normal(ks[5], (c_se, hid), jnp.float32) / np.sqrt(hid)),
    }


# ----------------------------- pure-JAX reference ----------------------------
def reference_forward(windows, origin_fc, params, *, nrois, in_channels):
    n = nrois
    x = windows.reshape(-1, in_channels, n, n).astype(jnp.float32)
    wr, wc, br, bc, w1, w2 = (params["wr"], params["wc"], params["br"],
                              params["bc"], params["w1"], params["w2"])
    row = jnp.einsum("bcik,cok->boi", x, wr) + br.reshape(1, -1, 1)
    col = jnp.einsum("bckj,cok->boj", x, wc) + bc.reshape(1, -1, 1)
    cross = row[:, :, :, None] + col[:, :, None, :]
    sum_adj = jnp.concatenate([cross, origin_fc[:, None]], axis=1)   # (B, C_se, N, N)
    pooled = sum_adj.mean(axis=(2, 3))                               # (B, C_se)
    s1 = jax.nn.relu(pooled @ w1.T)
    s2 = jax.nn.sigmoid(s1 @ w2.T)
    out = jnp.sum(sum_adj * s2[:, :, None, None], axis=1)
    out_tanh = jnp.tanh(out)
    out = jnp.where(jnp.abs(out_tanh) < 0.3, 0.0, out_tanh)
    out = (out + jnp.swapaxes(out, 1, 2)) / 2
    return out, out_tanh


def _assert_close(out, ref, ref_tanh, atol, label):
    """Tight check everywhere except entries sitting on the 0.3 threshold,
    where a tiny numeric difference may legitimately flip the hard cutoff."""
    out = np.asarray(out); ref = np.asarray(ref); ref_tanh = np.asarray(ref_tanh)
    diff = np.abs(out - ref)
    near = np.abs(np.abs(ref_tanh) - 0.3) < 1e-3
    near = near | np.swapaxes(near, 1, 2)
    tol = np.where(near, 0.2, atol)
    assert np.all(diff <= tol), (
        f"{label}: Pallas kernel does not match reference "
        f"(max diff {diff.max():.3e}, non-near max "
        f"{np.where(near, 0.0, diff).max():.3e})")


# ---------------------------------- main -------------------------------------
if __name__ == "__main__":
    C_IN, NROIS = 4, 16
    key = jax.random.PRNGKey(0)
    k_w, k_fc, k_p, k_w2, k_fc2 = jax.random.split(key, 5)
    params = init_params(k_p, C_IN, NROIS)

    # --- case 1: tiny batch, f32 transfer, single tile, full forward ---------
    B = 2
    windows = jax.random.normal(k_w, (B, C_IN, NROIS, NROIS), jnp.float32)
    origin_fc = jax.random.normal(k_fc, (B, NROIS, NROIS), jnp.float32)
    edge_index, edge_attr, out_adj = cross_conv_block_forward(
        windows, None, B, origin_fc, params, nrois=NROIS, in_channels=C_IN,
        compute_dtype=jnp.float32)
    out_adj = jax.block_until_ready(out_adj)
    assert out_adj.shape == (B, NROIS, NROIS)
    ref, ref_tanh = reference_forward(windows, origin_fc, params,
                                      nrois=NROIS, in_channels=C_IN)
    _assert_close(out_adj, ref, ref_tanh, atol=2e-4, label="f32")

    # --- case 2: larger batch, bf16 transfer, exercises multi-tile grid + pad -
    B2 = 50
    windows2 = jax.random.normal(k_w2, (B2, C_IN, NROIS, NROIS), jnp.float32)
    origin_fc2 = jax.random.normal(k_fc2, (B2, NROIS, NROIS), jnp.float32)
    out_adj2 = cross_conv_block_pallas(windows2, origin_fc2, params,
                                       nrois=NROIS, in_channels=C_IN,
                                       compute_dtype=jnp.bfloat16)
    out_adj2 = jax.block_until_ready(out_adj2)
    assert out_adj2.shape == (B2, NROIS, NROIS)
    # reference sees the same bf16-quantized x/fc (kernel keeps weights & accum f32)
    wq = windows2.astype(jnp.bfloat16).astype(jnp.float32)
    fq = origin_fc2.astype(jnp.bfloat16).astype(jnp.float32)
    ref2, ref2_tanh = reference_forward(wq, fq, params,
                                        nrois=NROIS, in_channels=C_IN)
    _assert_close(out_adj2, ref2, ref2_tanh, atol=2e-4, label="bf16")

    print("KERNEL_OK")
</pallas_src>

<mosaic_0001>
module attributes {stable_mosaic.version = 11 : i64} {
  func.func @_cross_conv_block_kernel(%arg0: i32, %arg1: memref<2x16x128xf32, #tpu.memory_space<vmem>>, %arg2: memref<2x512xf32, #tpu.memory_space<vmem>>, %arg3: memref<128x32xf32, #tpu.memory_space<vmem>>, %arg4: memref<1x16xf32, #tpu.memory_space<vmem>>, %arg5: memref<17x8xf32, #tpu.memory_space<vmem>>, %arg6: memref<8x17xf32, #tpu.memory_space<vmem>>, %arg7: memref<32x512xf32, #tpu.memory_space<vmem>>, %arg8: memref<2x256xf32, #tpu.memory_space<vmem>>) attributes {dimension_semantics = [#tpu.dimension_semantics<parallel>], iteration_bounds = array<i64: 1>, scalar_prefetch = 0 : i64, scratch_operands = 0 : i64, tpu.core_type = #tpu.core_type<tc>, window_params = [{transform_indices = @transform_0, window_bounds = array<i64: 2, 16, 128>}, {transform_indices = @transform_1, window_bounds = array<i64: 2, 512>}, {pipeline_mode = #tpu.pipeline_mode<synchronous>, transform_indices = @transform_2, window_bounds = array<i64: 128, 32>}, {pipeline_mode = #tpu.pipeline_mode<synchronous>, transform_indices = @transform_3, window_bounds = array<i64: 1, 16>}, {pipeline_mode = #tpu.pipeline_mode<synchronous>, transform_indices = @transform_4, window_bounds = array<i64: 17, 8>}, {pipeline_mode = #tpu.pipeline_mode<synchronous>, transform_indices = @transform_5, window_bounds = array<i64: 8, 17>}, {pipeline_mode = #tpu.pipeline_mode<synchronous>, transform_indices = @transform_6, window_bounds = array<i64: 32, 512>}, {transform_indices = @transform_7, window_bounds = array<i64: 2, 256>}]} {
    %c0 = arith.constant 0 : index
    %c0_0 = arith.constant 0 : index
    %c0_1 = arith.constant 0 : index
    %0 = vector.load %arg1[%c0, %c0_0, %c0_1] : memref<2x16x128xf32, #tpu.memory_space<vmem>>, vector<2x16x128xf32>
    %1 = vector.shape_cast %0 : vector<2x16x128xf32> to vector<32x128xf32>
    %c0_2 = arith.constant 0 : index
    %c0_3 = arith.constant 0 : index
    %2 = vector.load %arg2[%c0_2, %c0_3] : memref<2x512xf32, #tpu.memory_space<vmem>>, vector<2x512xf32>
    %c0_4 = arith.constant 0 : index
    %c0_5 = arith.constant 0 : index
    %3 = vector.load %arg3[%c0_4, %c0_5] : memref<128x32xf32, #tpu.memory_space<vmem>>, vector<128x32xf32>
    %cst = arith.constant dense<0.000000e+00> : vector<32x32xf32>
    %4 = tpu.matmul %1, %3, %cst {dimension_numbers = #tpu.dot_dimension_numbers<[1], [0], [0], [1], [0, 0, 1, 1], [], []>} : vector<32x128xf32>, vector<128x32xf32>, vector<32x32xf32> -> vector<32x32xf32>
    %5 = vector.shape_cast %4 : vector<32x32xf32> to vector<2x16x32xf32>
    %c0_6 = arith.constant 0 : index
    %c0_7 = arith.constant 0 : index
    %6 = vector.load %arg4[%c0_6, %c0_7] : memref<1x16xf32, #tpu.memory_space<vmem>>, vector<1x16xf32>
    %cst_8 = arith.constant dense<0.000000e+00> : vector<2x32xf32>
    %7 = vector.multi_reduction <add>, %5, %cst_8 [1] : vector<2x16x32xf32> to vector<2x32xf32>
    %8 = vector.extract_strided_slice %7 {offsets = [0, 0], sizes = [2, 16], strides = [1, 1]} : vector<2x32xf32> to vector<2x16xf32>
    %9 = vector.extract_strided_slice %7 {offsets = [0, 16], sizes = [2, 16], strides = [1, 1]} : vector<2x32xf32> to vector<2x16xf32>
    %10 = arith.addf %8, %9 : vector<2x16xf32>
    %cst_9 = arith.constant 6.250000e-02 : f32
    %11 = vector.broadcast %cst_9 : f32 to vector<2x16xf32>
    %12 = arith.mulf %10, %11 : vector<2x16xf32>
    %13 = vector.broadcast %6 : vector<1x16xf32> to vector<2x16xf32>
    %14 = arith.addf %12, %13 : vector<2x16xf32>
    %15 = vector.extract_strided_slice %2 {offsets = [0, 0], sizes = [2, 256], strides = [1, 1]} : vector<2x512xf32> to vector<2x256xf32>
    %cst_10 = arith.constant dense<0.000000e+00> : vector<2xf32>
    %16 = vector.multi_reduction <add>, %15, %cst_10 [1] : vector<2x256xf32> to vector<2xf32>
    %17 = vector.shape_cast %16 : vector<2xf32> to vector<2x1xf32>
    %cst_11 = arith.constant 3.906250e-03 : f32
    %18 = vector.broadcast %cst_11 : f32 to vector<2x1xf32>
    %19 = arith.mulf %17, %18 : vector<2x1xf32>
    %20 = tpu.concatenate %14, %19 in 1 : vector<2x16xf32>, vector<2x1xf32> -> vector<2x17xf32>
    %c0_12 = arith.constant 0 : index
    %c0_13 = arith.constant 0 : index
    %21 = vector.load %arg5[%c0_12, %c0_13] : memref<17x8xf32, #tpu.memory_space<vmem>>, vector<17x8xf32>
    %cst_14 = arith.constant dense<0.000000e+00> : vector<2x8xf32>
    %22 = tpu.matmul %20, %21, %cst_14 {dimension_numbers = #tpu.dot_dimension_numbers<[1], [0], [0], [1], [0, 0, 1, 1], [], []>} : vector<2x17xf32>, vector<17x8xf32>, vector<2x8xf32> -> vector<2x8xf32>
    %cst_15 = arith.constant 0.000000e+00 : f32
    %23 = vector.broadcast %cst_15 : f32 to vector<2x8xf32>
    %24 = arith.maximumf %22, %23 : vector<2x8xf32>
    %c0_16 = arith.constant 0 : index
    %c0_17 = arith.constant 0 : index
    %25 = vector.load %arg6[%c0_16, %c0_17] : memref<8x17xf32, #tpu.memory_space<vmem>>, vector<8x17xf32>
    %cst_18 = arith.constant dense<0.000000e+00> : vector<2x17xf32>
    %26 = tpu.matmul %24, %25, %cst_18 {dimension_numbers = #tpu.dot_dimension_numbers<[1], [0], [0], [1], [0, 0, 1, 1], [], []>} : vector<2x8xf32>, vector<8x17xf32>, vector<2x17xf32> -> vector<2x17xf32>
    %27 = arith.negf %26 : vector<2x17xf32>
    %28 = math.exp %27 : vector<2x17xf32>
    %cst_19 = arith.constant 1.000000e+00 : f32
    %29 = vector.broadcast %cst_19 : f32 to vector<2x17xf32>
    %30 = arith.addf %29, %28 : vector<2x17xf32>
    %31 = arith.divf %29, %30 : vector<2x17xf32>
    %32 = vector.extract_strided_slice %31 {offsets = [0, 0], sizes = [2, 16], strides = [1, 1]} : vector<2x17xf32> to vector<2x16xf32>
    %33 = vector.extract_strided_slice %31 {offsets = [0, 16], sizes = [2, 1], strides = [1, 1]} : vector<2x17xf32> to vector<2x1xf32>
    %34 = vector.extract_strided_slice %5 {offsets = [0, 0, 0], sizes = [2, 16, 16], strides = [1, 1, 1]} : vector<2x16x32xf32> to vector<2x16x16xf32>
    %35 = vector.shape_cast %32 : vector<2x16xf32> to vector<2x1x16xf32>
    %36 = vector.broadcast %35 : vector<2x1x16xf32> to vector<2x16x16xf32>
    %37 = arith.mulf %34, %36 : vector<2x16x16xf32>
    %cst_20 = arith.constant dense<0.000000e+00> : vector<2x16xf32>
    %38 = vector.multi_reduction <add>, %37, %cst_20 [2] : vector<2x16x16xf32> to vector<2x16xf32>
    %39 = vector.extract_strided_slice %5 {offsets = [0, 0, 16], sizes = [2, 16, 16], strides = [1, 1, 1]} : vector<2x16x32xf32> to vector<2x16x16xf32>
    %40 = vector.shape_cast %32 : vector<2x16xf32> to vector<2x1x16xf32>
    %41 = vector.broadcast %40 : vector<2x1x16xf32> to vector<2x16x16xf32>
    %42 = arith.mulf %39, %41 : vector<2x16x16xf32>
    %cst_21 = arith.constant dense<0.000000e+00> : vector<2x16xf32>
    %43 = vector.multi_reduction <add>, %42, %cst_21 [2] : vector<2x16x16xf32> to vector<2x16xf32>
    %44 = vector.broadcast %6 : vector<1x16xf32> to vector<2x16xf32>
    %45 = arith.mulf %32, %44 : vector<2x16xf32>
    %cst_22 = arith.constant dense<0.000000e+00> : vector<2xf32>
    %46 = vector.multi_reduction <add>, %45, %cst_22 [1] : vector<2x16xf32> to vector<2xf32>
    %47 = vector.shape_cast %46 : vector<2xf32> to vector<2x1xf32>
    %48 = tpu.concatenate %38, %43 in 1 : vector<2x16xf32>, vector<2x16xf32> -> vector<2x32xf32>
    %c0_23 = arith.constant 0 : index
    %c0_24 = arith.constant 0 : index
    %49 = vector.load %arg7[%c0_23, %c0_24] : memref<32x512xf32, #tpu.memory_space<vmem>>, vector<32x512xf32>
    %cst_25 = arith.constant dense<0.000000e+00> : vector<2x512xf32>
    %50 = tpu.matmul %48, %49, %cst_25 {dimension_numbers = #tpu.dot_dimension_numbers<[1], [0], [0], [1], [0, 0, 1, 1], [], []>} : vector<2x32xf32>, vector<32x512xf32>, vector<2x512xf32> -> vector<2x512xf32>
    %51 = vector.broadcast %47 : vector<2x1xf32> to vector<2x512xf32>
    %52 = arith.addf %50, %51 : vector<2x512xf32>
    %53 = vector.broadcast %33 : vector<2x1xf32> to vector<2x512xf32>
    %54 = arith.mulf %53, %2 : vector<2x512xf32>
    %55 = arith.addf %52, %54 : vector<2x512xf32>
    %56 = math.tanh %55 : vector<2x512xf32>
    %57 = math.absf %56 : vector<2x512xf32>
    %cst_26 = arith.constant 3.000000e-01 : f32
    %58 = vector.broadcast %cst_26 : f32 to vector<2x512xf32>
    %59 = arith.cmpf olt, %57, %58 : vector<2x512xf32>
    %cst_27 = arith.constant 0.000000e+00 : f32
    %60 = vector.broadcast %cst_27 : f32 to vector<2x512xf32>
    %61 = arith.select %59, %60, %56 : vector<2x512xi1>, vector<2x512xf32>
    %62 = vector.extract_strided_slice %61 {offsets = [0, 0], sizes = [2, 256], strides = [1, 1]} : vector<2x512xf32> to vector<2x256xf32>
    %63 = vector.extract_strided_slice %61 {offsets = [0, 256], sizes = [2, 256], strides = [1, 1]} : vector<2x512xf32> to vector<2x256xf32>
    %64 = arith.addf %62, %63 : vector<2x256xf32>
    %cst_28 = arith.constant 5.000000e-01 : f32
    %65 = vector.broadcast %cst_28 : f32 to vector<2x256xf32>
    %66 = arith.mulf %65, %64 : vector<2x256xf32>
    %c0_29 = arith.constant 0 : index
    %c0_30 = arith.constant 0 : index
    %67 = vector.load %arg8[%c0_29, %c0_30] : memref<2x256xf32, #tpu.memory_space<vmem>>, vector<2x256xf32>
    tpu.vector_store %arg8[%c0_29, %c0_30], %66 {strides = array<i32>} : memref<2x256xf32, #tpu.memory_space<vmem>>, vector<2x256xf32>,
    return
  }
  func.func @transform_0(%arg0: i32) -> (i32, i32, i32) {
    %c0_i32 = arith.constant 0 : i32
    %c0_i32_0 = arith.constant 0 : i32
    %c0_i32_1 = arith.constant 0 : i32
    return %arg0, %c0_i32, %c0_i32_0 : i32, i32, i32
  }
  func.func @transform_1(%arg0: i32) -> (i32, i32) {
    %c0_i32 = arith.constant 0 : i32
    %c0_i32_0 = arith.constant 0 : i32
    return %arg0, %c0_i32 : i32, i32
  }
  func.func @transform_2(%arg0: i32) -> (i32, i32) {
    %c0_i32 = arith.constant 0 : i32
    %c0_i32_0 = arith.constant 0 : i32
    %c0_i32_1 = arith.constant 0 : i32
    return %c0_i32, %c0_i32_0 : i32, i32
  }
  func.func @transform_3(%arg0: i32) -> (i32, i32) {
    %c0_i32 = arith.constant 0 : i32
    %c0_i32_0 = arith.constant 0 : i32
    %c0_i32_1 = arith.constant 0 : i32
    return %c0_i32, %c0_i32_0 : i32, i32
  }
  func.func @transform_4(%arg0: i32) -> (i32, i32) {
    %c0_i32 = arith.constant 0 : i32
    %c0_i32_0 = arith.constant 0 : i32
    %c0_i32_1 = arith.constant 0 : i32
    return %c0_i32, %c0_i32_0 : i32, i32
  }
  func.func @transform_5(%arg0: i32) -> (i32, i32) {
    %c0_i32 = arith.constant 0 : i32
    %c0_i32_0 = arith.constant 0 : i32
    %c0_i32_1 = arith.constant 0 : i32
    return %c0_i32, %c0_i32_0 : i32, i32
  }
  func.func @transform_6(%arg0: i32) -> (i32, i32) {
    %c0_i32 = arith.constant 0 : i32
    %c0_i32_0 = arith.constant 0 : i32
    %c0_i32_1 = arith.constant 0 : i32
    return %c0_i32, %c0_i32_0 : i32, i32
  }
  func.func @transform_7(%arg0: i32) -> (i32, i32) {
    %c0_i32 = arith.constant 0 : i32
    %c0_i32_0 = arith.constant 0 : i32
    return %arg0, %c0_i32 : i32, i32
  }
}

</mosaic_0001>

<llo_original>
// kernel: cross_conv_block_pallas.1
$region0: #{cross_conv_block_pallas.1}
  #allocation0 [shape = 'u32[]', space=smem, size = 0x4, offset = 0x4, fixed_abs, tag = 'smem constant byte address 0x4 - core index']
  #allocation1 [shape = 'u32[72,128]{1,0:T(1,128)}', space=vmem, size = 0x9000, scoped, tag = 'internal scratch']
  %s0 = inlined_call_operand.vmem [shape: f32[2,16,128], index: 0, kind: input, shape index: {}]
  %s1 = inlined_call_operand.vmem [shape: f32[2,512], index: 1, kind: input, shape index: {}]
  %s2 = inlined_call_operand.vmem [shape: f32[128,32], index: 2, kind: input, shape index: {}]
  %s3 = inlined_call_operand.vmem [shape: f32[1,16], index: 3, kind: input, shape index: {}]
  %s4 = inlined_call_operand.vmem [shape: f32[17,8], index: 4, kind: input, shape index: {}]
  %s5 = inlined_call_operand.vmem [shape: f32[8,17], index: 5, kind: input, shape index: {}]
  %s6 = inlined_call_operand.vmem [shape: f32[32,512], index: 6, kind: input, shape index: {}]
  %s7 = inlined_call_operand.vmem [shape: f32[2,256], index: 7, kind: output, shape index: {}]
  %s8 = sld [smem:[#allocation0]]
  $region38: #{cross_conv_block_pallas.1} parent=0
    _
  %s10 = ssub.s32 1, %s8
  %s11 = scalar_select 0, %s10, %s8
  // Predicated region
  $region2: #{cross_conv_block_pallas.1} parent=0 // pred_check
    _
  $region3: #{cross_conv_block_pallas.1} parent=0 // pred_check_branch
    %13 = sbr.rel (0) target = $region5
  $region4: #{cross_conv_block_pallas.1} parent=0 // pred_region
    _
  $region5: #{cross_conv_block_pallas.1} parent=0 // pred_fallthru
    _
  // Predicated region
  $region6: #{cross_conv_block_pallas.1} parent=0 // pred_check
    _
  $region7: #{cross_conv_block_pallas.1} parent=0 // pred_check_branch
    %15 = sbr.rel (0) target = $region9
  $region8: #{cross_conv_block_pallas.1} parent=0 // pred_region
    _
  $region9: #{cross_conv_block_pallas.1} parent=0 // pred_fallthru
    _
  // Predicated region
  $region10: #{cross_conv_block_pallas.1} parent=0 // pred_check
    _
  $region11: #{cross_conv_block_pallas.1} parent=0 // pred_check_branch
    %17 = sbr.rel (0) target = $region13
  $region12: #{cross_conv_block_pallas.1} parent=0 // pred_region
    _
  $region13: #{cross_conv_block_pallas.1} parent=0 // pred_fallthru
    _
  // Predicated region
  $region14: #{cross_conv_block_pallas.1} parent=0 // pred_check
    _
  $region15: #{cross_conv_block_pallas.1} parent=0 // pred_check_branch
    %19 = sbr.rel (0) target = $region17
  $region16: #{cross_conv_block_pallas.1} parent=0 // pred_region
    _
  $region17: #{cross_conv_block_pallas.1} parent=0 // pred_fallthru
    _
  // Predicated region
  $region18: #{cross_conv_block_pallas.1} parent=0 // pred_check
    _
  $region19: #{cross_conv_block_pallas.1} parent=0 // pred_check_branch
    %21 = sbr.rel (0) target = $region21
  $region20: #{cross_conv_block_pallas.1} parent=0 // pred_region
    _
  $region21: #{cross_conv_block_pallas.1} parent=0 // pred_fallthru
    _
  // Predicated region
  $region22: #{cross_conv_block_pallas.1} parent=0 // pred_check
    _
  $region23: #{cross_conv_block_pallas.1} parent=0 // pred_check_branch
    %23 = sbr.rel (0) target = $region25
  $region24: #{cross_conv_block_pallas.1} parent=0 // pred_region
    _
  $region25: #{cross_conv_block_pallas.1} parent=0 // pred_fallthru
    _
  // Predicated region
  $region26: #{cross_conv_block_pallas.1} parent=0 // pred_check
    _
  $region27: #{cross_conv_block_pallas.1} parent=0 // pred_check_branch
    %25 = sbr.rel (0) target = $region29
  $region28: #{cross_conv_block_pallas.1} parent=0 // pred_region
    _
  $region29: #{cross_conv_block_pallas.1} parent=0 // pred_fallthru
    _
  %v26 = vld [vmem:[%s0] sm:$0xff]
  %v27 = vld [vmem:[%s0 + $0x8] sm:$0xff]
  %v28 = vld [vmem:[%s0 + $0x10] sm:$0xff]
  %v29 = vld [vmem:[%s0 + $0x18] sm:$0xff]
  %v30 = vld [vmem:[%s1] sm:$0xff]
  %v31 = vld [vmem:[%s2] sm:$0xff]
  %v32 = vld [vmem:[%s2 + $0x8] sm:$0xff]
  %v33 = vld [vmem:[%s2 + $0x10] sm:$0xff]
  %v34 = vld [vmem:[%s2 + $0x18] sm:$0xff]
  %v35 = vld [vmem:[%s2 + $0x20] sm:$0xff]
  %v36 = vld [vmem:[%s2 + $0x28] sm:$0xff]
  %v37 = vld [vmem:[%s2 + $0x30] sm:$0xff]
  %v38 = vld [vmem:[%s2 + $0x38] sm:$0xff]
  %v39 = vld [vmem:[%s2 + $0x40] sm:$0xff]
  %v40 = vld [vmem:[%s2 + $0x48] sm:$0xff]
  %v41 = vld [vmem:[%s2 + $0x50] sm:$0xff]
  %v42 = vld [vmem:[%s2 + $0x58] sm:$0xff]
  %v43 = vld [vmem:[%s2 + $0x60] sm:$0xff]
  %v44 = vld [vmem:[%s2 + $0x68] sm:$0xff]
  %v45 = vld [vmem:[%s2 + $0x70] sm:$0xff]
  %v46 = vld [vmem:[%s2 + $0x78] sm:$0xff]
  %47 = vmatpush.msra.mxu0 %v46
  %48 = vmatpush.msra.mxu0 %v45
  %49 = vmatpush.msra.mxu0 %v44
  %50 = vmatpush.msra.mxu0 %v43
  %51 = vmatpush.msra.mxu0 %v42
  %52 = vmatpush.msra.mxu0 %v41
  %53 = vmatpush.msra.mxu0 %v40
  %54 = vmatpush.msra.mxu0 %v39
  %55 = vmatpush.msra.mxu0 %v38
  %56 = vmatpush.msra.mxu0 %v37
  %57 = vmatpush.msra.mxu0 %v36
  %58 = vmatpush.msra.mxu0 %v35
  %59 = vmatpush.msra.mxu0 %v34
  %60 = vmatpush.msra.mxu0 %v33
  %61 = vmatpush.msra.mxu0 %v32
  %62 = vmatpush.msra.mxu0 %v31
  %63 = vmatmul.f32.gmra.mxu0 %v26
  %v64 = vpop.f32.mrf.mxu0
  %v65 = vadd.f32 0.0, %v64
  %66 = vmatmul.f32.gmra.mxu0 %v27
  %v67 = vpop.f32.mrf.mxu0
  %v68 = vadd.f32 0.0, %v67
  %69 = vmatmul.f32.gmra.mxu0 %v28
  %v70 = vpop.f32.mrf.mxu0
  %v71 = vadd.f32 0.0, %v70
  %72 = vmatmul.f32.gmra.mxu0 %v29
  %v73 = vpop.f32.mrf.mxu0
  %v74 = vadd.f32 0.0, %v73
  %75 = vdwg.mxu0
  %v76 = vld [vmem:[%s3] sm:$0x1]
  %vm77 = vcmask 261120
  %v78 = vsel %vm77, %v65, 0.0
  %v79 = vsel %vm77, %v68, 0.0
  %v80 = vadd.f32 %v78, %v79
  %v81 = vrot.slane %v80, 4
  %v82 = vadd.f32 %v80, %v81
  %v83 = vrot.slane %v82, 2
  %v84 = vadd.f32 %v82, %v83
  %v85 = vrot.slane %v84, 1
  %v86 = vadd.f32 %v84, %v85
  %v87 = vsel %vm77, %v71, 0.0
  %v88 = vsel %vm77, %v74, 0.0
  %v89 = vadd.f32 %v87, %v88
  %v90 = vrot.slane %v89, 4
  %v91 = vadd.f32 %v89, %v90
  %v92 = vrot.slane %v91, 2
  %v93 = vadd.f32 %v91, %v92
  %v94 = vrot.slane %v93, 1
  %v95 = vadd.f32 %v93, %v94
  %98 = vrot.lane.b32.xlu0 %v86, 112
  %v99 = vpop.permute.xlu0 %98
  %100 = vrot.lane.b32.xlu0 %v95, 112
  %v101 = vpop.permute.xlu0 %100
  %v104 = vadd.f32 %v86, %v99
  %v105 = vadd.f32 %v95, %v101
  %v106 = vmul.f32 %v104, 0.0625
  %v107 = vmul.f32 %v105, 0.0625
  %v109 = vperm.slane %v76, 0
  %v111 = vadd.f32 %v106, %v109
  %v112 = vadd.f32 %v107, %v109
  %114 = vst [vmem:[#allocation1] ss:$4 sm:$0xff] %v30
  %v115 = vld.sshfl [vmem:[#allocation1] sm:$0xff pattern:$0x73625140]
  %v116 = vld.sshfl [vmem:[#allocation1 + $0x8] sm:$0xff pattern:$0x73625140]
  %vm119 = vcmask 1041408
  %v120 = vsel %vm119, %v115, 0.0
  %v121 = vsel %vm119, %v116, 0.0
  %v122 = vadd.f32 %v120, %v121
  %123 = vadd.xlane.f32.xlu0 %v122
  %v124 = vpop.xlane.xlu0 %123
  %v125 = vmul.f32 %v124, 0.00390625
  %v128 = vrot.slane %v112, 7
  %vm129 = vcmask 1041409
  %v130 = vsel %vm129, %v128, %v111
  %vm132 = vcmask 130048
  %v133 = vsel %vm132, %v130, %v125
  %v134 = vld [vmem:[%s4] sm:$0xff]
  %v135 = vld [vmem:[%s4 + $0x8] sm:$0xff]
  %v136 = vld [vmem:[%s4 + $0x10] sm:$0x1]
  %vm137 = vcmask 138240
  %v139 = vsel %vm137, %v133, 0
  %vm141 = vcmask 1040384
  %v143 = vsel %vm141, %v136, 0
  %145 = vmatpush.msra.mxu0 0.0
  %146 = vmatpush.msra.mxu0 0.0
  %147 = vmatpush.msra.mxu0 0.0
  %148 = vmatpush.msra.mxu0 0.0
  %149 = vmatpush.msra.mxu0 0.0
  %150 = vmatpush.msra.mxu0 0.0
  %151 = vmatpush.msra.mxu0 0.0
  %152 = vmatpush.msra.mxu0 0.0
  %153 = vmatpush.msra.mxu0 0.0
  %154 = vmatpush.msra.mxu0 0.0
  %155 = vmatpush.msra.mxu0 0.0
  %156 = vmatpush.msra.mxu0 0.0
  %157 = vmatpush.msra.mxu0 0.0
  %158 = vmatpush.msra.mxu0 %v143
  %159 = vmatpush.msra.mxu0 %v135
  %160 = vmatpush.msra.mxu0 %v134
  %161 = vmatmul.f32.gmra.mxu0 %v139
  %v162 = vpop.f32.mrf.mxu0
  %v163 = vadd.f32 0.0, %v162
  %164 = vdwg.mxu0
  %v165 = vmax.f32 %v163, 0.0
  %v166 = vld [vmem:[%s5] sm:$0xff]
  %vm167 = vcmask 64512
  %v169 = vsel %vm167, %v165, 0
  %171 = vmatpush.msra.mxu0 0.0
  %172 = vmatpush.msra.mxu0 0.0
  %173 = vmatpush.msra.mxu0 0.0
  %174 = vmatpush.msra.mxu0 0.0
  %175 = vmatpush.msra.mxu0 0.0
  %176 = vmatpush.msra.mxu0 0.0
  %177 = vmatpush.msra.mxu0 0.0
  %178 = vmatpush.msra.mxu0 0.0
  %179 = vmatpush.msra.mxu0 0.0
  %180 = vmatpush.msra.mxu0 0.0
  %181 = vmatpush.msra.mxu0 0.0
  %182 = vmatpush.msra.mxu0 0.0
  %183 = vmatpush.msra.mxu0 0.0
  %184 = vmatpush.msra.mxu0 0.0
  %185 = vmatpush.msra.mxu0 0.0
  %186 = vmatpush.msra.mxu0 %v166
  %187 = vmatmul.f32.gmra.mxu0 %v169
  %v188 = vpop.f32.mrf.mxu0
  %v189 = vadd.f32 0.0, %v188
  %190 = vdwg.mxu0
  %v191 = vxor.u32 %v189, 2147483648
  %v192 = vmul.f32 %v191, 1.442695
  %v193 = vpow.pop %v192
  %v194 = vadd.f32 %v193, 1.0
  %v195 = vrcp.pop %v194
  %v196 = vmul.f32 %v194, %v195
  %v197 = vsub.f32 1.0, %v196
  %v198 = vmul.f32 %v195, %v197
  %v199 = vadd.f32 %v195, %v198
  %vm200 = vweird.f32 %v194
  %vm201 = vweird.f32 %v195
  %vm202 = vmor %vm200, %vm201
  %v203 = vsel %vm202, %v195, %v199
  %v204 = vand.u32 2147483647, %v194
  %vm205 = vcmp.eq.f32.partialorder %v204, 8.507059e+37
  %v206 = vand.u32 %v194, 2147483648
  %v207 = vor.u32 1.1754944e-38, %v206
  %v208 = vsel %vm205, %v207, %v203
  %v209 = vmul.f32 1.0, %v208
  %v211 = vrot.slane %v209, 1
  %v212 = vperm.slane %v209, 0
  %v213 = vperm.slane %v211, 0
  %v216 = vmul.f32 %v65, %v212
  %v217 = vmul.f32 %v68, %v212
  %v218 = vmul.f32 %v71, %v213
  %v219 = vmul.f32 %v74, %v213
  %v220 = vsel %vm132, %v216, 0.0
  %221 = vadd.xlane.f32.xlu0 %v220
  %v222 = vpop.xlane.xlu0 %221
  %v223 = vsel %vm132, %v217, 0.0
  %224 = vadd.xlane.f32.xlu0 %v223
  %v225 = vpop.xlane.xlu0 %224
  %v226 = vsel %vm132, %v218, 0.0
  %227 = vadd.xlane.f32.xlu0 %v226
  %v228 = vpop.xlane.xlu0 %227
  %v229 = vsel %vm132, %v219, 0.0
  %230 = vadd.xlane.f32.xlu0 %v229
  %v231 = vpop.xlane.xlu0 %230
  %232 = vrot.lane.b32.xlu0 %v212, 16
  %v233 = vpop.permute.xlu0 %232
  %234 = vrot.lane.b32.xlu0 %v213, 16
  %v235 = vpop.permute.xlu0 %234
  %v238 = vmul.f32 %v65, %v233
  %v239 = vmul.f32 %v68, %v233
  %v240 = vmul.f32 %v71, %v235
  %v241 = vmul.f32 %v74, %v235
  %246 = vrot.lane.b32.xlu0 %v238, 112
  %v247 = vpop.permute.xlu0 %246
  %248 = vrot.lane.b32.xlu0 %v239, 112
  %v249 = vpop.permute.xlu0 %248
  %250 = vrot.lane.b32.xlu0 %v240, 112
  %v251 = vpop.permute.xlu0 %250
  %252 = vrot.lane.b32.xlu0 %v241, 112
  %v253 = vpop.permute.xlu0 %252
  %v258 = vsel %vm132, %v247, 0.0
  %259 = vadd.xlane.f32.xlu0 %v258
  %v260 = vpop.xlane.xlu0 %259
  %v261 = vsel %vm132, %v249, 0.0
  %262 = vadd.xlane.f32.xlu0 %v261
  %v263 = vpop.xlane.xlu0 %262
  %v264 = vsel %vm132, %v251, 0.0
  %265 = vadd.xlane.f32.xlu0 %v264
  %v266 = vpop.xlane.xlu0 %265
  %v267 = vsel %vm132, %v253, 0.0
  %268 = vadd.xlane.f32.xlu0 %v267
  %v269 = vpop.xlane.xlu0 %268
  %v270 = vmul.f32 %v209, %v109
  %vm271 = vcmask 123904
  %v272 = vsel %vm271, %v270, 0.0
  %273 = vadd.xlane.f32.xlu0 %v272
  %v274 = vpop.xlane.xlu0 %273
  %v279 = vlaneseq
  %v280 = vand.u32 %v279, 127
  %v281 = vperm.slane %v222, %v280
  %v282 = vadd.s32 %v280, 4294967288
  %v283 = vperm.slane %v225, %v282
  %vm284 = vcmask 130112
  %v285 = vsel %vm284, %v283, %v281
  %v286 = vperm.slane %v228, %v280
  %v287 = vperm.slane %v231, %v282
  %v288 = vsel %vm284, %v287, %v286
  %v289 = vsel %vm129, %v288, %v285
  %v295 = vadd.s32 %v280, 4294967280
  %v296 = vperm.slane %v260, %v295
  %v297 = vadd.s32 %v280, 4294967272
  %v298 = vperm.slane %v263, %v297
  %vm299 = vcmask 261312
  %v300 = vsel %vm299, %v298, %v296
  %v301 = vperm.slane %v266, %v295
  %v302 = vperm.slane %v269, %v297
  %v303 = vsel %vm299, %v302, %v301
  %v304 = vsel %vm129, %v303, %v300
  %v306 = vsel %vm132, %v289, %v304
  %v307 = vld [vmem:[%s6] sm:$0xff]
  %v308 = vld [vmem:[%s6 + $0x8] sm:$0xff]
  %v309 = vld [vmem:[%s6 + $0x10] sm:$0xff]
  %v310 = vld [vmem:[%s6 + $0x18] sm:$0xff]
  %v311 = vld [vmem:[%s6 + $0x20] sm:$0xff]
  %v312 = vld [vmem:[%s6 + $0x28] sm:$0xff]
  %v313 = vld [vmem:[%s6 + $0x30] sm:$0xff]
  %v314 = vld [vmem:[%s6 + $0x38] sm:$0xff]
  %v315 = vld [vmem:[%s6 + $0x40] sm:$0xff]
  %v316 = vld [vmem:[%s6 + $0x48] sm:$0xff]
  %v317 = vld [vmem:[%s6 + $0x50] sm:$0xff]
  %v318 = vld [vmem:[%s6 + $0x58] sm:$0xff]
  %v319 = vld [vmem:[%s6 + $0x60] sm:$0xff]
  %v320 = vld [vmem:[%s6 + $0x68] sm:$0xff]
  %v321 = vld [vmem:[%s6 + $0x70] sm:$0xff]
  %v322 = vld [vmem:[%s6 + $0x78] sm:$0xff]
  %v324 = vsel %vm77, %v306, 0
  %326 = vmatpush.msra.mxu0 0.0
  %327 = vmatpush.msra.mxu0 0.0
  %328 = vmatpush.msra.mxu0 0.0
  %329 = vmatpush.msra.mxu0 0.0
  %330 = vmatpush.msra.mxu0 0.0
  %331 = vmatpush.msra.mxu0 0.0
  %332 = vmatpush.msra.mxu0 0.0
  %333 = vmatpush.msra.mxu0 0.0
  %334 = vmatpush.msra.mxu0 0.0
  %335 = vmatpush.msra.mxu0 0.0
  %336 = vmatpush.msra.mxu0 0.0
  %337 = vmatpush.msra.mxu0 0.0
  %338 = vmatpush.msra.mxu0 %v319
  %339 = vmatpush.msra.mxu0 %v315
  %340 = vmatpush.msra.mxu0 %v311
  %341 = vmatpush.msra.mxu0 %v307
  %342 = vmatmul.f32.gmra.mxu0 %v324
  %v343 = vpop.f32.mrf.mxu0
  %v344 = vadd.f32 %v274, %v343
  %345 = vdwg.mxu0
  %346 = vmatpush.msra.mxu0 0.0
  %347 = vmatpush.msra.mxu0 0.0
  %348 = vmatpush.msra.mxu0 0.0
  %349 = vmatpush.msra.mxu0 0.0
  %350 = vmatpush.msra.mxu0 0.0
  %351 = vmatpush.msra.mxu0 0.0
  %352 = vmatpush.msra.mxu0 0.0
  %353 = vmatpush.msra.mxu0 0.0
  %354 = vmatpush.msra.mxu0 0.0
  %355 = vmatpush.msra.mxu0 0.0
  %356 = vmatpush.msra.mxu0 0.0
  %357 = vmatpush.msra.mxu0 0.0
  %358 = vmatpush.msra.mxu0 %v320
  %359 = vmatpush.msra.mxu0 %v316
  %360 = vmatpush.msra.mxu0 %v312
  %361 = vmatpush.msra.mxu0 %v308
  %362 = vmatmul.f32.gmra.mxu0 %v324
  %v363 = vpop.f32.mrf.mxu0
  %v364 = vadd.f32 %v274, %v363
  %365 = vdwg.mxu0
  %366 = vmatpush.msra.mxu0 0.0
  %367 = vmatpush.msra.mxu0 0.0
  %368 = vmatpush.msra.mxu0 0.0
  %369 = vmatpush.msra.mxu0 0.0
  %370 = vmatpush.msra.mxu0 0.0
  %371 = vmatpush.msra.mxu0 0.0
  %372 = vmatpush.msra.mxu0 0.0
  %373 = vmatpush.msra.mxu0 0.0
  %374 = vmatpush.msra.mxu0 0.0
  %375 = vmatpush.msra.mxu0 0.0
  %376 = vmatpush.msra.mxu0 0.0
  %377 = vmatpush.msra.mxu0 0.0
  %378 = vmatpush.msra.mxu0 %v321
  %379 = vmatpush.msra.mxu0 %v317
  %380 = vmatpush.msra.mxu0 %v313
  %381 = vmatpush.msra.mxu0 %v309
  %382 = vmatmul.f32.gmra.mxu0 %v324
  %v383 = vpop.f32.mrf.mxu0
  %v384 = vadd.f32 %v274, %v383
  %385 = vdwg.mxu0
  %386 = vmatpush.msra.mxu0 0.0
  %387 = vmatpush.msra.mxu0 0.0
  %388 = vmatpush.msra.mxu0 0.0
  %389 = vmatpush.msra.mxu0 0.0
  %390 = vmatpush.msra.mxu0 0.0
  %391 = vmatpush.msra.mxu0 0.0
  %392 = vmatpush.msra.mxu0 0.0
  %393 = vmatpush.msra.mxu0 0.0
  %394 = vmatpush.msra.mxu0 0.0
  %395 = vmatpush.msra.mxu0 0.0
  %396 = vmatpush.msra.mxu0 0.0
  %397 = vmatpush.msra.mxu0 0.0
  %398 = vmatpush.msra.mxu0 %v322
  %399 = vmatpush.msra.mxu0 %v318
  %400 = vmatpush.msra.mxu0 %v314
  %401 = vmatpush.msra.mxu0 %v310
  %402 = vmatmul.f32.gmra.mxu0 %v324
  %v403 = vpop.f32.mrf.mxu0
  %v404 = vadd.f32 %v274, %v403
  %405 = vdwg.mxu0
  %406 = vset.pattern.permute.xlu0 16
  %407 = vperm.xlu0 %406, %v209
  %v408 = vpop.permute.xlu0 %407
  %410 = vst [vmem:[#allocation1] ss:$4 sm:$0xff] %v30
  %v411 = vld.sshfl [vmem:[#allocation1] sm:$0xff pattern:$0x73625140]
  %v412 = vld.sshfl [vmem:[#allocation1 + $0x8] sm:$0xff pattern:$0x73625140]
  %v413 = vld.sshfl [vmem:[#allocation1 + $0x10] sm:$0xff pattern:$0x73625140]
  %v414 = vld.sshfl [vmem:[#allocation1 + $0x18] sm:$0xff pattern:$0x73625140]
  %v419 = vmul.f32 %v408, %v411
  %v420 = vmul.f32 %v408, %v412
  %v421 = vmul.f32 %v408, %v413
  %v422 = vmul.f32 %v408, %v414
  %v423 = vadd.f32 %v344, %v419
  %v424 = vadd.f32 %v364, %v420
  %v425 = vadd.f32 %v384, %v421
  %v426 = vadd.f32 %v404, %v422
  %v427 = vtanh.pop %v423
  %v428 = vtanh.pop %v424
  %v429 = vtanh.pop %v425
  %v430 = vtanh.pop %v426
  %v431 = vand.u32 2147483647, %v427
  %v432 = vand.u32 2147483647, %v428
  %v433 = vand.u32 2147483647, %v429
  %v434 = vand.u32 2147483647, %v430
  %vm435 = vcmp.lt.f32.partialorder %v431, 0.3
  %vm436 = vcmp.lt.f32.partialorder %v432, 0.3
  %vm437 = vcmp.lt.f32.partialorder %v433, 0.3
  %vm438 = vcmp.lt.f32.partialorder %v434, 0.3
  %v439 = vsel %vm435, 0.0, %v427
  %v440 = vsel %vm436, 0.0, %v428
  %v441 = vsel %vm437, 0.0, %v429
  %v442 = vsel %vm438, 0.0, %v430
  %v443 = vadd.f32 %v439, %v441
  %v444 = vadd.f32 %v440, %v442
  %v445 = vmul.f32 %v443, 0.5
  %v446 = vmul.f32 %v444, 0.5
  %v449 = vrot.slane %v446, 6
  %v450 = vsel %vm119, %v445, %v449
  %452 = vst [vmem:[%s7] sm:$0xf] %v450
  // Predicated region
  $region30: #{cross_conv_block_pallas.1} parent=0 // pred_check
    _
  $region31: #{cross_conv_block_pallas.1} parent=0 // pred_check_branch
    %454 = sbr.rel (0) target = $region33
  $region32: #{cross_conv_block_pallas.1} parent=0 // pred_region
    _
  $region33: #{cross_conv_block_pallas.1} parent=0 // pred_fallthru
    _
  // Predicated region
  $region34: #{cross_conv_block_pallas.1} parent=0 // pred_check
    _
  $region35: #{cross_conv_block_pallas.1} parent=0 // pred_check_branch
    %456 = sbr.rel (0) target = $region37
  $region36: #{cross_conv_block_pallas.1} parent=0 // pred_region
    _
  $region37: #{cross_conv_block_pallas.1} parent=0 // pred_fallthru
    _

</llo_original>
